<compile_context>
chip_gen: v5e
topology: v5e:2x2
jax: 0.10.0
libtpu: 0.0.40
codegen_flags: <defaults>
</compile_context>

<pallas_src>
import jax
import jax.numpy as jnp
from jax.experimental import pallas as pl
from jax.experimental.pallas import tpu as pltpu


# ------------------------------ hardware params ------------------------------

def _hw_params():
    """Generation-adaptive (per-stream tile bytes, pipeline buffers, vmem cap)."""
    vmem_cap = 128 * 1024 * 1024
    try:
        info = pltpu.get_tpu_info()
        vmem_cap = int(getattr(info, "vmem_capacity_bytes", vmem_cap))
    except Exception:
        pass
    if vmem_cap >= 96 * 1024 * 1024:
        # v5e / v6e: 128 MiB VMEM -> large streaming tiles, double buffered.
        return 6 * 1024 * 1024, 2, vmem_cap
    # v7x: 64 MiB per-TC VMEM, ~3.2 TB/s per-TC HBM -> smaller tiles, deeper
    # buffering so the DMA engine stays saturated.
    return 3 * 1024 * 1024, 3, vmem_cap


# ------------------------------ layout helpers --------------------------------

def _flat_views(recons, target, n_halves):
    """Lane-dense views: target -> (rows, L), recons -> (n_halves, rows, L).
    Never pads in HBM (reshapes of contiguous arrays are free)."""
    per = target.size
    C = target.shape[-1]
    if C % 128 == 0 and C <= 4096:
        lanes = C                               # native layout already lane-dense
    else:
        lanes = None
        for cand in (512, 256, 128):
            if per % cand == 0:
                lanes = cand
                break
        if lanes is None:
            # Ragged channel count: tile a (B*N, C) view directly.  The last
            # block dim equals the full array dim so any C is legal; only cost
            # is partially-filled lanes on this rare path (no HBM pad pass).
            lanes = C
    t2 = target.reshape(-1, lanes)
    r3 = recons.reshape(n_halves, -1, lanes)
    return t2, r3, lanes


def _choose_tile_rows(rows, lanes, itemsize, tile_bytes):
    lanes_pad = ((lanes + 127) // 128) * 128    # VMEM tiles pad lanes to 128
    target_rows = max(8, tile_bytes // (lanes_pad * max(itemsize, 1)))
    if rows <= target_rows:
        return rows                             # single block == full extent
    tr = target_rows - (target_rows % 8)
    return max(8, min(tr, rows))


# --------------------------------- kernel -------------------------------------

def _partial_kernel(n_rec, tile_rows, n_tiles, tail_rows):
    """Per-modality kernel body (all closure args are Python ints)."""
    masked = tail_rows != tile_rows

    def kernel(t_ref, r_ref, o_ref):
        t = t_ref[...]                                   # target tile, read once
        if masked:
            i = pl.program_id(0)
            valid = jnp.where(i == n_tiles - 1, tail_rows, tile_rows)
            row_ids = jax.lax.broadcasted_iota(jnp.int32, (tile_rows, 1), 0)
            row_mask = row_ids < valid
        for h in range(n_rec):       # static unroll: 1 or 2 reconstruction halves
            # Diff in the input dtype (bf16 stays bf16 on v6e/v7x); upcast only
            # for the square/accumulate.
            d = (r_ref[h] - t).astype(jnp.float32)
            sq = d * d
            # Lane-reduce first so the tail mask only touches (tile_rows, 1)
            # row-sums instead of every element.  Keep the select form (it does
            # not propagate garbage/NaN from the out-of-bounds tail rows).
            row_sums = jnp.sum(sq, axis=-1, keepdims=True)
            if masked:
                row_sums = jnp.where(row_mask, row_sums, 0.0)
            # Per-tile partial sum replicated over one (8, 128) block -> every
            # grid step writes a disjoint, fully tiled output block (safe under
            # a "parallel" grid axis).  Host divides the replication back out.
            o_ref[h] = jnp.full((8, 128), jnp.sum(row_sums), dtype=jnp.float32)

    return kernel


def _mse_means(recons, target, n_halves, tile_bytes=None, buffers=None):
    """recons: (n_halves*B, N, C); target: (B, N, C).
    Returns (n_halves,) f32: mean((recons[h*B:(h+1)*B] - target)**2) per half."""
    per = target.size
    t2, r3, lanes = _flat_views(recons, target, n_halves)
    rows = t2.shape[0]

    hw_tile, hw_buf, vmem_cap = _hw_params()
    if tile_bytes is None:
        tile_bytes = hw_tile
    if buffers is None:
        buffers = hw_buf

    itemsize = max(jnp.dtype(t2.dtype).itemsize, jnp.dtype(r3.dtype).itemsize)
    tile_rows = _choose_tile_rows(rows, lanes, itemsize, tile_bytes)
    n_tiles = pl.cdiv(rows, tile_rows)
    tail_rows = rows - (n_tiles - 1) * tile_rows

    kernel = _partial_kernel(n_halves, tile_rows, n_tiles, tail_rows)

    def _spec(shape, idx):
        if buffers != 2:
            try:
                return pl.BlockSpec(shape, idx, pipeline_mode=pl.Buffered(buffers))
            except Exception:
                pass                      # older API: fall back to default depth
        return pl.BlockSpec(shape, idx)

    in_specs = [
        _spec((tile_rows, lanes), lambda i: (i, 0)),
        _spec((n_halves, tile_rows, lanes), lambda i: (0, i, 0)),
    ]

    # Derive the scoped-VMEM limit from the actual live working set.
    lanes_pad = ((lanes + 127) // 128) * 128
    live_bytes = buffers * (1 + n_halves) * tile_rows * lanes_pad * itemsize
    live_bytes += buffers * n_halves * 8 * 128 * 4            # output blocks
    vmem_limit = int(min(max(live_bytes + 8 * 1024 * 1024, 24 * 1024 * 1024),
                         int(0.85 * vmem_cap)))

    partials = pl.pallas_call(
        kernel,
        grid=(n_tiles,),
        in_specs=in_specs,
        out_specs=pl.BlockSpec((n_halves, 8, 128), lambda i: (0, i, 0)),
        out_shape=jax.ShapeDtypeStruct((n_halves, n_tiles * 8, 128), jnp.float32),
        compiler_params=pltpu.CompilerParams(
            # TODO(synk): on v7x, switch this axis to pltpu.CORE_PARALLEL once
            # 2-TC sharding is verified (output blocks are already disjoint).
            dimension_semantics=("parallel",),
            vmem_limit_bytes=vmem_limit,
        ),
    )(t2, r3)

    # Each per-tile sum was replicated 8*128 times; fold the replication back
    # out and normalize by the true element count (mean over B*N*C).
    return partials.sum(axis=(1, 2)) / (1024.0 * float(per))


# ----------------------------- differentiable API -----------------------------

@jax.custom_vjp
def paired_mse_means(recons, target):
    """recons: (2B, N, C); target: (B, N, C).
    Returns (2,) f32: [mean((recons[:B]-target)^2), mean((recons[B:]-target)^2)]."""
    return _mse_means(recons, target, 2)


def _paired_fwd(recons, target):
    return _mse_means(recons, target, 2), (recons, target)


def _paired_bwd(res, g):
    recons, target = res
    B = target.shape[0]
    inv = 2.0 / float(target.size)
    t32 = target.astype(jnp.float32)
    # Per-half gradients from slices (no concatenated target, no stored f32
    # diff tensor); XLA fuses sub + scale + cast per half.
    g0 = (recons[:B].astype(jnp.float32) - t32) * (g[0] * inv)
    g1 = (recons[B:].astype(jnp.float32) - t32) * (g[1] * inv)
    g_rec = jnp.concatenate(
        [g0.astype(recons.dtype), g1.astype(recons.dtype)], axis=0)
    g_tgt = (-(g0 + g1)).astype(target.dtype)
    return g_rec, g_tgt


paired_mse_means.defvjp(_paired_fwd, _paired_bwd)


@jax.custom_vjp
def mse_mean(recons, target):
    """recons, target: (B, N, C) -> scalar f32 mean squared error."""
    return _mse_means(recons, target, 1)[0]


def _single_fwd(recons, target):
    return _mse_means(recons, target, 1)[0], (recons, target)


def _single_bwd(res, g):
    recons, target = res
    scale = 2.0 * g / float(recons.size)
    d = (recons.astype(jnp.float32) - target.astype(jnp.float32)) * scale
    return d.astype(recons.dtype), (-d).astype(target.dtype)


mse_mean.defvjp(_single_fwd, _single_bwd)


# ---------------------------------- module ------------------------------------

class MultiModalLoss:
    """JAX/Pallas re-implementation of the PyTorch MultiModalLoss forward."""

    def __init__(self, lamb):
        self.lamb = lamb  # length-4 sequence of float weights

    def __call__(self, output, rgb_target, flow_target):
        rgb_recons, flow_recons = output
        rgb_recons_loss = None
        flow_recons_loss = None
        rgb_flow_recons_loss = None
        flow_rgb_recons_loss = None

        if rgb_recons is None:
            flow_recons_loss = mse_mean(flow_recons, flow_target)
            total_loss = flow_recons_loss
        elif flow_recons is None:
            rgb_recons_loss = mse_mean(rgb_recons, rgb_target)
            total_loss = rgb_recons_loss
        else:
            rgb_means = paired_mse_means(rgb_recons, rgb_target)
            flow_means = paired_mse_means(flow_recons, flow_target)
            rgb_recons_loss, rgb_flow_recons_loss = rgb_means[0], rgb_means[1]
            flow_recons_loss, flow_rgb_recons_loss = flow_means[0], flow_means[1]
            total_loss = (self.lamb[0] * rgb_recons_loss
                          + self.lamb[1] * flow_rgb_recons_loss
                          + self.lamb[2] * flow_recons_loss
                          + self.lamb[3] * rgb_flow_recons_loss)

        return {
            'sum': total_loss,
            'rgb_recons': rgb_recons_loss,
            'flow_recons': flow_recons_loss,
            'rgb_flow_recons': rgb_flow_recons_loss,
            'flow_rgb_recons': flow_rgb_recons_loss,
        }


# --------------------------------- reference -----------------------------------

def _reference_loss(lamb, rgb_recons, flow_recons, rgb_target, flow_target):
    """Pure-JAX reference mirroring the PyTorch forward (dual-modality case)."""
    B = rgb_target.shape[0]
    rgb_cat = jnp.concatenate([rgb_target, rgb_target], axis=0)
    flow_cat = jnp.concatenate([flow_target, flow_target], axis=0)
    ur = (rgb_recons - rgb_cat) ** 2
    uf = (flow_recons - flow_cat) ** 2
    rgb_l, rgb_flow_l = jnp.mean(ur[:B]), jnp.mean(ur[B:])
    flow_l, flow_rgb_l = jnp.mean(uf[:B]), jnp.mean(uf[B:])
    total = (lamb[0] * rgb_l + lamb[1] * flow_rgb_l
             + lamb[2] * flow_l + lamb[3] * rgb_flow_l)
    return total, rgb_l, flow_l, rgb_flow_l, flow_rgb_l


if __name__ == "__main__":
    # Small deterministic shapes consistent with the module's forward:
    #   rgb_recons: (2*B, N, C1), flow_recons: (2*B, N, C2)
    #   rgb_target: (B, N, C1),   flow_target: (B, N, C2)
    B, N, C1, C2 = 2, 8, 32, 16
    lamb = (1.0, 0.5, 1.0, 0.5)

    key = jax.random.PRNGKey(0)
    k1, k2, k3, k4 = jax.random.split(key, 4)
    rgb_recons = jax.random.normal(k1, (2 * B, N, C1), dtype=jnp.float32)
    flow_recons = jax.random.normal(k2, (2 * B, N, C2), dtype=jnp.float32)
    rgb_target = jax.random.normal(k3, (B, N, C1), dtype=jnp.float32)
    flow_target = jax.random.normal(k4, (B, N, C2), dtype=jnp.float32)

    loss_fn = MultiModalLoss(lamb)
    loss = loss_fn((rgb_recons, flow_recons), rgb_target, flow_target)
    loss = jax.tree_util.tree_map(jax.block_until_ready, loss)

    ref_total, ref_rgb, ref_flow, ref_rgb_flow, ref_flow_rgb = _reference_loss(
        lamb, rgb_recons, flow_recons, rgb_target, flow_target)
    assert jnp.allclose(loss['sum'], ref_total, rtol=1e-5, atol=1e-5)
    assert jnp.allclose(loss['rgb_recons'], ref_rgb, rtol=1e-5, atol=1e-5)
    assert jnp.allclose(loss['flow_recons'], ref_flow, rtol=1e-5, atol=1e-5)
    assert jnp.allclose(loss['rgb_flow_recons'], ref_rgb_flow, rtol=1e-5, atol=1e-5)
    assert jnp.allclose(loss['flow_rgb_recons'], ref_flow_rgb, rtol=1e-5, atol=1e-5)

    # Single-modality branches (rgb-only / flow-only).
    rgb_only = MultiModalLoss(lamb)((rgb_recons[:B], None), rgb_target, flow_target)
    flow_only = MultiModalLoss(lamb)((None, flow_recons[:B]), rgb_target, flow_target)
    jax.block_until_ready(rgb_only['sum'])
    jax.block_until_ready(flow_only['sum'])
    assert jnp.allclose(rgb_only['sum'],
                        jnp.mean((rgb_recons[:B] - rgb_target) ** 2),
                        rtol=1e-5, atol=1e-5)
    assert jnp.allclose(flow_only['sum'],
                        jnp.mean((flow_recons[:B] - flow_target) ** 2),
                        rtol=1e-5, atol=1e-5)

    # Multi-tile grid + tail-row masking path (force tiny 8-row tiles).
    B2, N2, C3 = 2, 41, 128
    kk1, kk2 = jax.random.split(jax.random.PRNGKey(1))
    r_big = jax.random.normal(kk1, (2 * B2, N2, C3), dtype=jnp.float32)
    t_big = jax.random.normal(kk2, (B2, N2, C3), dtype=jnp.float32)
    means = _mse_means(r_big, t_big, 2, tile_bytes=8 * C3 * 4)
    jax.block_until_ready(means)
    assert jnp.allclose(means[0], jnp.mean((r_big[:B2] - t_big) ** 2),
                        rtol=1e-5, atol=1e-5)
    assert jnp.allclose(means[1], jnp.mean((r_big[B2:] - t_big) ** 2),
                        rtol=1e-5, atol=1e-5)

    # Ragged channel path (C and B*N*C not multiples of 128): no HBM padding,
    # tiled on the (B*N, C) view; also exercise multi-tile + tail mask there.
    B3, N3, C4 = 2, 7, 24
    kr1, kr2 = jax.random.split(jax.random.PRNGKey(2))
    r_rag = jax.random.normal(kr1, (2 * B3, N3, C4), dtype=jnp.float32)
    t_rag = jax.random.normal(kr2, (B3, N3, C4), dtype=jnp.float32)
    means_rag = _mse_means(r_rag, t_rag, 2)
    means_rag_tiled = _mse_means(r_rag, t_rag, 2, tile_bytes=8 * 128 * 4)
    jax.block_until_ready(means_rag)
    jax.block_until_ready(means_rag_tiled)
    for m in (means_rag, means_rag_tiled):
        assert jnp.allclose(m[0], jnp.mean((r_rag[:B3] - t_rag) ** 2),
                            rtol=1e-5, atol=1e-5)
        assert jnp.allclose(m[1], jnp.mean((r_rag[B3:] - t_rag) ** 2),
                            rtol=1e-5, atol=1e-5)

    # Gradients: custom_vjp with a fused, closed-form plain-JAX backward.
    def kernel_total(rr, fr, rt, ft):
        return MultiModalLoss(lamb)((rr, fr), rt, ft)['sum']

    def ref_total_fn(rr, fr, rt, ft):
        return _reference_loss(lamb, rr, fr, rt, ft)[0]

    gk = jax.grad(kernel_total, argnums=(0, 1, 2, 3))(
        rgb_recons, flow_recons, rgb_target, flow_target)
    gr = jax.grad(ref_total_fn, argnums=(0, 1, 2, 3))(
        rgb_recons, flow_recons, rgb_target, flow_target)
    for a, b in zip(gk, gr):
        assert jnp.allclose(a, b, rtol=1e-4, atol=1e-6)

    print("KERNEL_OK")
</pallas_src>

<mosaic_0001>
module attributes {stable_mosaic.version = 11 : i64} {
  func.func @kernel(%arg0: i32, %arg1: memref<1x512xf32, #tpu.memory_space<vmem>>, %arg2: memref<2x1x512xf32, #tpu.memory_space<vmem>>, %arg3: memref<2x8x128xf32, #tpu.memory_space<vmem>>) attributes {dimension_semantics = [#tpu.dimension_semantics<parallel>], iteration_bounds = array<i64: 1>, scalar_prefetch = 0 : i64, scratch_operands = 0 : i64, tpu.core_type = #tpu.core_type<tc>, window_params = [{transform_indices = @transform_0, window_bounds = array<i64: 1, 512>}, {transform_indices = @transform_1, window_bounds = array<i64: 2, 1, 512>}, {transform_indices = @transform_2, window_bounds = array<i64: 2, 8, 128>}]} {
    %c0 = arith.constant 0 : index
    %c0_0 = arith.constant 0 : index
    %0 = vector.load %arg1[%c0, %c0_0] : memref<1x512xf32, #tpu.memory_space<vmem>>, vector<1x512xf32>
    %c0_1 = arith.constant 0 : index
    %c0_2 = arith.constant 0 : index
    %c0_3 = arith.constant 0 : index
    %1 = vector.load %arg2[%c0_1, %c0_2, %c0_3] : memref<2x1x512xf32, #tpu.memory_space<vmem>>, vector<1x1x512xf32>
    %2 = vector.shape_cast %1 : vector<1x1x512xf32> to vector<1x512xf32>
    %3 = arith.subf %2, %0 : vector<1x512xf32>
    %4 = arith.mulf %3, %3 : vector<1x512xf32>
    %cst = arith.constant dense<0.000000e+00> : vector<1xf32>
    %5 = vector.multi_reduction <add>, %4, %cst [1] : vector<1x512xf32> to vector<1xf32>
    %6 = vector.shape_cast %5 : vector<1xf32> to vector<1x1xf32>
    %7 = vector.shape_cast %6 : vector<1x1xf32> to vector<1x1x1xf32>
    %cst_4 = arith.constant dense<0.000000e+00> : vector<1xf32>
    %8 = vector.multi_reduction <add>, %7, %cst_4 [1, 2] : vector<1x1x1xf32> to vector<1xf32>
    %9 = vector.shape_cast %8 : vector<1xf32> to vector<1x1x1xf32>
    %10 = vector.extract %9[0, 0, 0] : f32 from vector<1x1x1xf32>
    %11 = vector.broadcast %10 : f32 to vector<8x128xf32>
    %c0_5 = arith.constant 0 : index
    %c0_6 = arith.constant 0 : index
    %c0_7 = arith.constant 0 : index
    %12 = vector.load %arg3[%c0_5, %c0_6, %c0_7] : memref<2x8x128xf32, #tpu.memory_space<vmem>>, vector<1x8x128xf32>
    %13 = vector.shape_cast %12 : vector<1x8x128xf32> to vector<8x128xf32>
    %14 = vector.shape_cast %11 : vector<8x128xf32> to vector<1x8x128xf32>
    tpu.vector_store %arg3[%c0_5, %c0_6, %c0_7], %14 {strides = array<i32>} : memref<2x8x128xf32, #tpu.memory_space<vmem>>, vector<1x8x128xf32>,
    %c1 = arith.constant 1 : index
    %c0_8 = arith.constant 0 : index
    %c0_9 = arith.constant 0 : index
    %15 = vector.load %arg2[%c1, %c0_8, %c0_9] : memref<2x1x512xf32, #tpu.memory_space<vmem>>, vector<1x1x512xf32>
    %16 = vector.shape_cast %15 : vector<1x1x512xf32> to vector<1x512xf32>
    %17 = arith.subf %16, %0 : vector<1x512xf32>
    %18 = arith.mulf %17, %17 : vector<1x512xf32>
    %cst_10 = arith.constant dense<0.000000e+00> : vector<1xf32>
    %19 = vector.multi_reduction <add>, %18, %cst_10 [1] : vector<1x512xf32> to vector<1xf32>
    %20 = vector.shape_cast %19 : vector<1xf32> to vector<1x1xf32>
    %21 = vector.shape_cast %20 : vector<1x1xf32> to vector<1x1x1xf32>
    %cst_11 = arith.constant dense<0.000000e+00> : vector<1xf32>
    %22 = vector.multi_reduction <add>, %21, %cst_11 [1, 2] : vector<1x1x1xf32> to vector<1xf32>
    %23 = vector.shape_cast %22 : vector<1xf32> to vector<1x1x1xf32>
    %24 = vector.extract %23[0, 0, 0] : f32 from vector<1x1x1xf32>
    %25 = vector.broadcast %24 : f32 to vector<8x128xf32>
    %c1_12 = arith.constant 1 : index
    %c0_13 = arith.constant 0 : index
    %c0_14 = arith.constant 0 : index
    %26 = vector.load %arg3[%c1_12, %c0_13, %c0_14] : memref<2x8x128xf32, #tpu.memory_space<vmem>>, vector<1x8x128xf32>
    %27 = vector.shape_cast %26 : vector<1x8x128xf32> to vector<8x128xf32>
    %28 = vector.shape_cast %25 : vector<8x128xf32> to vector<1x8x128xf32>
    tpu.vector_store %arg3[%c1_12, %c0_13, %c0_14], %28 {strides = array<i32>} : memref<2x8x128xf32, #tpu.memory_space<vmem>>, vector<1x8x128xf32>,
    return
  }
  func.func @transform_0(%arg0: i32) -> (i32, i32) {
    %c0_i32 = arith.constant 0 : i32
    %c0_i32_0 = arith.constant 0 : i32
    return %arg0, %c0_i32 : i32, i32
  }
  func.func @transform_1(%arg0: i32) -> (i32, i32, i32) {
    %c0_i32 = arith.constant 0 : i32
    %c0_i32_0 = arith.constant 0 : i32
    %c0_i32_1 = arith.constant 0 : i32
    return %c0_i32, %arg0, %c0_i32_0 : i32, i32, i32
  }
  func.func @transform_2(%arg0: i32) -> (i32, i32, i32) {
    %c0_i32 = arith.constant 0 : i32
    %c0_i32_0 = arith.constant 0 : i32
    %c0_i32_1 = arith.constant 0 : i32
    return %c0_i32, %arg0, %c0_i32_0 : i32, i32, i32
  }
}

</mosaic_0001>

<llo_original>
// kernel: tpu_custom_call.1
$region0: #{tpu_custom_call.1}
  #allocation0 [shape = 'u32[]', space=smem, size = 0x4, offset = 0x4, fixed_abs, tag = 'smem constant byte address 0x4 - core index']
  #allocation1 [shape = 'u32[72,128]{1,0:T(1,128)}', space=vmem, size = 0x9000, scoped, tag = 'internal scratch']
  %s0 = inlined_call_operand.hbm [shape: f32[1,512], index: 0, kind: input, shape index: {}]
  %s1 = inlined_call_operand.hbm [shape: f32[2,1,512], index: 1, kind: input, shape index: {}]
  %s2 = inlined_call_operand.hbm [shape: f32[2,8,128], index: 2, kind: output, shape index: {}]
  %s3 = sld [smem:[#allocation0]]
  $region26: #{tpu_custom_call.1} parent=0
    _
  %s5 = ssub.s32 1, %s3
  %s6 = scalar_select 0, %s5, %s3
  $region1: #{tpu_custom_call.1} parent=0
    #allocation2 [shape = 'u8[2048]{0}', space=vmem, size = 0x800, scoped, tag = 'input window, operand 0, single buffered']
    #allocation3 [shape = 's32[1]{0}', space=sflag, size = 0x4, scoped, tag = 'scoped memory for tpu_custom_call.1']
    #allocation4 [shape = 's32[1]{0}', space=sflag, size = 0x4, scoped, tag = 'scoped memory for tpu_custom_call.1']
    #allocation5 [shape = 'u8[4096]{0}', space=vmem, size = 0x1000, scoped, tag = 'input window, operand 1, single buffered']
    #allocation6 [shape = 's32[1]{0}', space=sflag, size = 0x4, scoped, tag = 'scoped memory for tpu_custom_call.1']
    #allocation7 [shape = 'u8[8192]{0}', space=vmem, size = 0x2000, scoped, tag = 'output window, operand 0, single buffered']
    %7 = vsyncpa [#allocation3], 0
    %8 = vsyncpa [#allocation6], 0
    %9 = vsyncpa [#allocation4], 0
    // Predicated region
    $region2: #{tpu_custom_call.1} parent=1 // pred_check
      _
    $region3: #{tpu_custom_call.1} parent=1 // pred_check_branch
      %11 = sbr.rel (0) target = $region5
    $region4: #{tpu_custom_call.1} parent=1 // pred_region
      %13 = vsyncadd [#allocation3], 0
      %s15 = sshll.u32 %s0, 4
      %s16 = int_to_ptr.hbm [resolvable:$true] %s15
      %s17 = sshll.u32 [#allocation2], 4
      %s18 = int_to_ptr.vmem [resolvable:$true] %s17
      %20 = dma.hbm_to_vmem [thread:$0]  %s16, 64, %s18, [#allocation3]
    $region5: #{tpu_custom_call.1} parent=1 // pred_fallthru
      _
    // Predicated region
    $region6: #{tpu_custom_call.1} parent=1 // pred_check
      _
    $region7: #{tpu_custom_call.1} parent=1 // pred_check_branch
      %22 = sbr.rel (0) target = $region9
    $region8: #{tpu_custom_call.1} parent=1 // pred_region
      %24 = vsyncadd [#allocation6], 0
      %s25 = sshll.u32 %s1, 4
      %s26 = int_to_ptr.hbm [resolvable:$true] %s25
      %s27 = sshll.u32 [#allocation5], 4
      %s28 = int_to_ptr.vmem [resolvable:$true] %s27
      %33 = dma.hbm_to_vmem [thread:$0]  %s26, 128, %s28, [#allocation6], 64, 64, 4
    $region9: #{tpu_custom_call.1} parent=1 // pred_fallthru
      _
    // Predicated region
    $region10: #{tpu_custom_call.1} parent=1 // pred_check
      _
    $region11: #{tpu_custom_call.1} parent=1 // pred_check_branch
      %35 = sbr.rel (0) target = $region13
    $region12: #{tpu_custom_call.1} parent=1 // pred_region
      %37 = dma.done [#allocation3], 64
    $region13: #{tpu_custom_call.1} parent=1 // pred_fallthru
      _
    // Predicated region
    $region14: #{tpu_custom_call.1} parent=1 // pred_check
      _
    $region15: #{tpu_custom_call.1} parent=1 // pred_check_branch
      %39 = sbr.rel (0) target = $region17
    $region16: #{tpu_custom_call.1} parent=1 // pred_region
      %41 = dma.done [#allocation6], 128
    $region17: #{tpu_custom_call.1} parent=1 // pred_fallthru
      _
    %v42 = vld [vmem:[#allocation2] sm:$0xf]
    %v43 = vld [vmem:[#allocation5] sm:$0xf]
    %v44 = vsub.f32 %v43, %v42
    %v45 = vmul.f32 %v44, %v44
    %v47 = vperm.slane %v45, 0
    %v48 = vperm.slane %v45, 1
    %v49 = vperm.slane %v45, 2
    %v50 = vperm.slane %v45, 3
    %vm55 = vcmask 1040384
    %v56 = vsel %vm55, %v47, 0.0
    %v57 = vsel %vm55, %v48, 0.0
    %v58 = vadd.f32 %v56, %v57
    %v59 = vsel %vm55, %v49, 0.0
    %v60 = vadd.f32 %v58, %v59
    %v61 = vsel %vm55, %v50, 0.0
    %v62 = vadd.f32 %v60, %v61
    %63 = vadd.xlane.f32.xlu0 %v62
    %v64 = vpop.xlane.xlu0 %63
    %v65 = vadd.f32 %v64, 0.0
    %s66 = vtos %v65
    %v67 = vstv %s66
    %68 = vst [vmem:[#allocation7] sm:$0xff] %v67
    %s69 = scalar_lea.vmem [#allocation5], 4
    %v70 = vld [vmem:[%s69] sm:$0xf]
    %v71 = vsub.f32 %v70, %v42
    %v72 = vmul.f32 %v71, %v71
    %v74 = vperm.slane %v72, 0
    %v75 = vperm.slane %v72, 1
    %v76 = vperm.slane %v72, 2
    %v77 = vperm.slane %v72, 3
    %v82 = vsel %vm55, %v74, 0.0
    %v83 = vsel %vm55, %v75, 0.0
    %v84 = vadd.f32 %v82, %v83
    %v85 = vsel %vm55, %v76, 0.0
    %v86 = vadd.f32 %v84, %v85
    %v87 = vsel %vm55, %v77, 0.0
    %v88 = vadd.f32 %v86, %v87
    %89 = vadd.xlane.f32.xlu0 %v88
    %v90 = vpop.xlane.xlu0 %89
    %v91 = vadd.f32 %v90, 0.0
    %s92 = vtos %v91
    %v93 = vstv %s92
    %s94 = scalar_lea.vmem [#allocation7], 8
    %95 = vst [vmem:[%s94] sm:$0xff] %v93
    // Predicated region
    $region18: #{tpu_custom_call.1} parent=1 // pred_check
      _
    $region19: #{tpu_custom_call.1} parent=1 // pred_check_branch
      %97 = sbr.rel (0) target = $region21
    $region20: #{tpu_custom_call.1} parent=1 // pred_region
      %99 = vsyncadd [#allocation4], 0
      %s100 = sshll.u32 [#allocation7], 4
      %s101 = int_to_ptr.vmem [resolvable:$true] %s100
      %s102 = sshll.u32 %s2, 4
      %s103 = int_to_ptr.hbm [resolvable:$true] %s102
      %108 = dma.vmem_to_hbm [thread:$0]  %s101, 256, %s103, [#allocation4], 128, 128, 8
    $region21: #{tpu_custom_call.1} parent=1 // pred_fallthru
      _
    // Predicated region
    $region22: #{tpu_custom_call.1} parent=1 // pred_check
      _
    $region23: #{tpu_custom_call.1} parent=1 // pred_check_branch
      %110 = sbr.rel (0) target = $region25
    $region24: #{tpu_custom_call.1} parent=1 // pred_region
      %112 = dma.done [#allocation4], 256
    $region25: #{tpu_custom_call.1} parent=1 // pred_fallthru
      _
    %113 = vsyncpa [#allocation3], 1
    %114 = vsyncpa [#allocation6], 1
    %115 = vsyncpa [#allocation4], 1

</llo_original>
